<compile_context>
chip_gen: v7x
topology: tpu7x:2x2x1
jax: 0.10.0
libtpu: 0.0.40
codegen_flags: <defaults>
</compile_context>

<pallas_src>
import functools

import jax
import jax.numpy as jnp
from jax.experimental import pallas as pl
from jax.experimental.pallas import tpu as pltpu


def _dice_partial_kernel(logits_ref, labels_ref, inter_ref, union_ref):
    # Zero the per-depth-slice accumulators on the first pixel tile.
    @pl.when(pl.program_id(1) == 0)
    def _():
        inter_ref[...] = jnp.zeros_like(inter_ref)
        union_ref[...] = jnp.zeros_like(union_ref)

    labels = labels_ref[...]                                  # (1, TN) int32
    valid_mask = labels >= 0                                  # (1, TN) bool (padded/OOB -> False)
    valid = valid_mask.astype(jnp.float32)                    # (1, TN)

    # Stream logits in native dtype, upcast in kernel; mask OOB tail garbage
    # BEFORE max/exp (garbage could be Inf/NaN and would otherwise poison the
    # softmax even though it is weighted by zero later).
    logits = logits_ref[...].astype(jnp.float32)              # (C, TN)
    logits = jnp.where(valid_mask, logits, 0.0)               # broadcast (1,TN) over (C,TN)

    # Numerically-stable softmax over the channel (sublane) axis.
    m = jnp.max(logits, axis=0, keepdims=True)                # (1, TN)
    e = jnp.exp(logits - m)                                   # (C, TN)
    s = jnp.sum(e, axis=0, keepdims=True)                     # (1, TN)
    inv_s = pl.reciprocal(s, approx=False)                    # 1 EUP op / pixel instead of C divides
    p = e * inv_s                                             # softmax  (C, TN)

    # One-hot of labels via channel-axis iota (padded labels = -1 never match).
    class_idx = jax.lax.broadcasted_iota(jnp.int32, logits.shape, 0)   # (C, TN)
    onehot = (class_idx == labels).astype(jnp.float32)                 # (C, TN)

    prod_i = p * onehot                                       # intersection contributions
    prod_u = p * valid + onehot                               # union contributions (mask p for padded pixels)

    # Lane-partial accumulation: fold (C, TN) into (C, 128) with VPU adds only.
    tn = prod_i.shape[-1]
    lanes = inter_ref.shape[-1]
    inter_acc = inter_ref[...]
    union_acc = union_ref[...]
    for j in range(tn // lanes):
        lo = j * lanes
        inter_acc = inter_acc + prod_i[:, lo:lo + lanes]
        union_acc = union_acc + prod_u[:, lo:lo + lanes]
    inter_ref[...] = inter_acc
    union_ref[...] = union_acc


@functools.partial(jax.jit, static_argnames=("eps", "tile_n"))
def dice_loss(y_pred, y_true, weights=None, eps=1.0, tile_n=4096):
    """Pallas equivalent of DiceLoss.forward(y_pred, y_true, weights).

    y_pred: (D, C, H, W) logits (any float dtype), y_true: (D, H, W) int labels.
    Returns the scalar mean weighted dice loss.
    """
    D, C, H, W = y_pred.shape
    HW = H * W
    lanes = 128

    # Pick a pixel tile: large (default 4096) but no wider than the (128-rounded)
    # image so tiny inputs don't over-pad; always a multiple of 128 lanes.
    hw_rounded = pl.cdiv(HW, lanes) * lanes
    tile = min(int(tile_n), hw_rounded)
    tile = max(lanes, (tile // lanes) * lanes)
    n_tiles = pl.cdiv(HW, tile)
    n_padded = n_tiles * tile

    # Free reshape (no transpose, no logits padding): grid handles D directly.
    logits = y_pred.reshape(D, C, HW)
    labels = y_true.reshape(D, 1, HW).astype(jnp.int32)
    if n_padded != HW:
        labels = jnp.pad(labels, ((0, 0), (0, 0), (0, n_padded - HW)),
                         constant_values=-1)

    grid = (D, n_tiles)
    inter_p, union_p = pl.pallas_call(
        _dice_partial_kernel,
        out_shape=(
            jax.ShapeDtypeStruct((D, C, lanes), jnp.float32),   # lane-partial intersection
            jax.ShapeDtypeStruct((D, C, lanes), jnp.float32),   # lane-partial union
        ),
        grid_spec=pltpu.PrefetchScalarGridSpec(
            num_scalar_prefetch=0,
            grid=grid,
            in_specs=[
                pl.BlockSpec((pl.Squeezed(), C, tile), lambda d, i: (d, 0, i)),
                pl.BlockSpec((pl.Squeezed(), 1, tile), lambda d, i: (d, 0, i)),
            ],
            out_specs=(
                pl.BlockSpec((pl.Squeezed(), C, lanes), lambda d, i: (d, 0, 0)),
                pl.BlockSpec((pl.Squeezed(), C, lanes), lambda d, i: (d, 0, 0)),
            ),
        ),
        compiler_params=pltpu.CompilerParams(
            dimension_semantics=("parallel", "arbitrary")),
    )(logits, labels)

    # Glue: tiny final reductions + the dice formula.
    intersection = jnp.sum(inter_p, axis=(0, 2))               # (C,)
    union = jnp.sum(union_p, axis=(0, 2))                      # (C,)
    if weights is None:
        weights = jnp.ones((C,), jnp.float32)
    dice_per_channel = weights.astype(jnp.float32) * (
        1.0 - 2.0 * intersection / (union + eps))
    return jnp.mean(dice_per_channel)


def _reference_dice_loss(y_pred, y_true, weights=None, eps=1.0):
    """Pure-JAX reference mirroring the PyTorch DiceLoss semantics."""
    C = y_pred.shape[1]
    p = jax.nn.softmax(y_pred.astype(jnp.float32), axis=1)                 # (D,C,H,W)
    onehot = jax.nn.one_hot(y_true.astype(jnp.int32), C, axis=1,
                            dtype=jnp.float32)                             # (D,C,H,W)
    inter = jnp.sum(p * onehot, axis=(0, 2, 3))
    union = jnp.sum(p + onehot, axis=(0, 2, 3))
    if weights is None:
        weights = jnp.ones((C,), jnp.float32)
    return jnp.mean(weights * (1.0 - 2.0 * inter / (union + eps)))


if __name__ == "__main__":
    key = jax.random.PRNGKey(0)
    k1, k2, k3, k4 = jax.random.split(key, 4)

    # Case 1: aligned spatial size, default (weights=None).
    D, C, H, W = 2, 4, 16, 16
    y_pred = jax.random.normal(k1, (D, C, H, W), dtype=jnp.float32)
    y_true = jax.random.randint(k2, (D, H, W), 0, C, dtype=jnp.int32)

    out = dice_loss(y_pred, y_true)
    jax.block_until_ready(out)
    ref = _reference_dice_loss(y_pred, y_true)
    assert abs(float(out) - float(ref)) < 1e-4, (float(out), float(ref))

    # Case 1b: explicit class weights.
    weights = 0.5 + 0.25 * jnp.arange(C, dtype=jnp.float32)
    out_w = dice_loss(y_pred, y_true, weights)
    jax.block_until_ready(out_w)
    ref_w = _reference_dice_loss(y_pred, y_true, weights)
    assert abs(float(out_w) - float(ref_w)) < 1e-4, (float(out_w), float(ref_w))

    # Case 2: ragged spatial size (H*W not a multiple of 128) -> exercises the
    # in-kernel tail masking of the unpadded logits blocks.
    D2, C2, H2, W2 = 2, 4, 10, 10
    y_pred2 = jax.random.normal(k3, (D2, C2, H2, W2), dtype=jnp.float32)
    y_true2 = jax.random.randint(k4, (D2, H2, W2), 0, C2, dtype=jnp.int32)
    out2 = dice_loss(y_pred2, y_true2)
    jax.block_until_ready(out2)
    ref2 = _reference_dice_loss(y_pred2, y_true2)
    assert abs(float(out2) - float(ref2)) < 1e-4, (float(out2), float(ref2))

    print("KERNEL_OK")
</pallas_src>

<mosaic_0001>
module attributes {stable_mosaic.version = 11 : i64} {
  func.func @_dice_partial_kernel(%arg0: i32, %arg1: i32, %arg2: memref<1x4x256xf32, #tpu.memory_space<vmem>>, %arg3: memref<1x1x256xi32, #tpu.memory_space<vmem>>, %arg4: memref<1x4x128xf32, #tpu.memory_space<vmem>>, %arg5: memref<1x4x128xf32, #tpu.memory_space<vmem>>) attributes {dimension_semantics = [#tpu.dimension_semantics<parallel>, #tpu.dimension_semantics<arbitrary>], iteration_bounds = array<i64: 2, 1>, scalar_prefetch = 0 : i64, scratch_operands = 0 : i64, tpu.core_type = #tpu.core_type<tc>, window_params = [{transform_indices = @transform_0, window_bounds = array<i64: 1, 4, 256>}, {transform_indices = @transform_1, window_bounds = array<i64: 1, 1, 256>}, {transform_indices = @transform_2, window_bounds = array<i64: 1, 4, 128>}, {transform_indices = @transform_3, window_bounds = array<i64: 1, 4, 128>}]} {
    %c0_i32 = arith.constant 0 : i32
    %0 = arith.cmpi eq, %arg1, %c0_i32 : i32
    %1 = arith.extui %0 : i1 to i32
    %c0_i32_0 = arith.constant 0 : i32
    %2 = arith.cmpi ne, %1, %c0_i32_0 : i32
    scf.if %2 {
      %cst_21 = arith.constant 0.000000e+00 : f32
      %52 = vector.broadcast %cst_21 : f32 to vector<4x128xf32>
      %c0_22 = arith.constant 0 : index
      %c0_23 = arith.constant 0 : index
      %c0_24 = arith.constant 0 : index
      %53 = vector.load %arg4[%c0_22, %c0_23, %c0_24] : memref<1x4x128xf32, #tpu.memory_space<vmem>>, vector<1x4x128xf32>
      %54 = vector.shape_cast %53 : vector<1x4x128xf32> to vector<4x128xf32>
      %55 = vector.shape_cast %52 : vector<4x128xf32> to vector<1x4x128xf32>
      tpu.vector_store %arg4[%c0_22, %c0_23, %c0_24], %55 {strides = array<i32>} : memref<1x4x128xf32, #tpu.memory_space<vmem>>, vector<1x4x128xf32>,
      %cst_25 = arith.constant 0.000000e+00 : f32
      %56 = vector.broadcast %cst_25 : f32 to vector<4x128xf32>
      %c0_26 = arith.constant 0 : index
      %c0_27 = arith.constant 0 : index
      %c0_28 = arith.constant 0 : index
      %57 = vector.load %arg5[%c0_26, %c0_27, %c0_28] : memref<1x4x128xf32, #tpu.memory_space<vmem>>, vector<1x4x128xf32>
      %58 = vector.shape_cast %57 : vector<1x4x128xf32> to vector<4x128xf32>
      %59 = vector.shape_cast %56 : vector<4x128xf32> to vector<1x4x128xf32>
      tpu.vector_store %arg5[%c0_26, %c0_27, %c0_28], %59 {strides = array<i32>} : memref<1x4x128xf32, #tpu.memory_space<vmem>>, vector<1x4x128xf32>,
    } else {
    }
    %c0 = arith.constant 0 : index
    %c0_1 = arith.constant 0 : index
    %c0_2 = arith.constant 0 : index
    %3 = vector.load %arg3[%c0, %c0_1, %c0_2] : memref<1x1x256xi32, #tpu.memory_space<vmem>>, vector<1x1x256xi32>
    %4 = vector.shape_cast %3 : vector<1x1x256xi32> to vector<1x256xi32>
    %c0_i32_3 = arith.constant 0 : i32
    %5 = vector.broadcast %c0_i32_3 : i32 to vector<1x256xi32>
    %6 = arith.cmpi sge, %4, %5 : vector<1x256xi32>
    %7 = arith.extui %6 : vector<1x256xi1> to vector<1x256xi32>
    %8 = arith.sitofp %7 : vector<1x256xi32> to vector<1x256xf32>
    %c0_4 = arith.constant 0 : index
    %c0_5 = arith.constant 0 : index
    %c0_6 = arith.constant 0 : index
    %9 = vector.load %arg2[%c0_4, %c0_5, %c0_6] : memref<1x4x256xf32, #tpu.memory_space<vmem>>, vector<1x4x256xf32>
    %10 = vector.shape_cast %9 : vector<1x4x256xf32> to vector<4x256xf32>
    %cst = arith.constant 0.000000e+00 : f32
    %11 = vector.shape_cast %6 : vector<1x256xi1> to vector<1x256xi1>
    %12 = vector.broadcast %11 : vector<1x256xi1> to vector<4x256xi1>
    %13 = vector.broadcast %cst : f32 to vector<4x256xf32>
    %14 = arith.select %12, %10, %13 : vector<4x256xi1>, vector<4x256xf32>
    %cst_7 = arith.constant dense<0xFF800000> : vector<256xf32>
    %15 = vector.multi_reduction <maximumf>, %14, %cst_7 [0] : vector<4x256xf32> to vector<256xf32>
    %16 = vector.shape_cast %15 : vector<256xf32> to vector<1x256xf32>
    %17 = vector.broadcast %16 : vector<1x256xf32> to vector<4x256xf32>
    %18 = arith.subf %14, %17 : vector<4x256xf32>
    %19 = math.exp %18 : vector<4x256xf32>
    %cst_8 = arith.constant dense<0.000000e+00> : vector<256xf32>
    %20 = vector.multi_reduction <add>, %19, %cst_8 [0] : vector<4x256xf32> to vector<256xf32>
    %21 = vector.shape_cast %20 : vector<256xf32> to vector<1x256xf32>
    %22 = tpu.reciprocal %21 : vector<1x256xf32> -> vector<1x256xf32>
    %23 = vector.broadcast %22 : vector<1x256xf32> to vector<4x256xf32>
    %24 = arith.mulf %19, %23 : vector<4x256xf32>
    %25 = tpu.iota {dimensions = array<i32: 0>} : vector<4x256xi32>
    %26 = vector.broadcast %4 : vector<1x256xi32> to vector<4x256xi32>
    %27 = arith.cmpi eq, %25, %26 : vector<4x256xi32>
    %28 = arith.extui %27 : vector<4x256xi1> to vector<4x256xi32>
    %29 = arith.sitofp %28 : vector<4x256xi32> to vector<4x256xf32>
    %30 = arith.mulf %24, %29 : vector<4x256xf32>
    %31 = vector.broadcast %8 : vector<1x256xf32> to vector<4x256xf32>
    %32 = arith.mulf %24, %31 : vector<4x256xf32>
    %33 = arith.addf %32, %29 : vector<4x256xf32>
    %c0_9 = arith.constant 0 : index
    %c0_10 = arith.constant 0 : index
    %c0_11 = arith.constant 0 : index
    %34 = vector.load %arg4[%c0_9, %c0_10, %c0_11] : memref<1x4x128xf32, #tpu.memory_space<vmem>>, vector<1x4x128xf32>
    %35 = vector.shape_cast %34 : vector<1x4x128xf32> to vector<4x128xf32>
    %c0_12 = arith.constant 0 : index
    %c0_13 = arith.constant 0 : index
    %c0_14 = arith.constant 0 : index
    %36 = vector.load %arg5[%c0_12, %c0_13, %c0_14] : memref<1x4x128xf32, #tpu.memory_space<vmem>>, vector<1x4x128xf32>
    %37 = vector.shape_cast %36 : vector<1x4x128xf32> to vector<4x128xf32>
    %38 = vector.extract_strided_slice %30 {offsets = [0, 0], sizes = [4, 128], strides = [1, 1]} : vector<4x256xf32> to vector<4x128xf32>
    %39 = arith.addf %35, %38 : vector<4x128xf32>
    %40 = vector.extract_strided_slice %33 {offsets = [0, 0], sizes = [4, 128], strides = [1, 1]} : vector<4x256xf32> to vector<4x128xf32>
    %41 = arith.addf %37, %40 : vector<4x128xf32>
    %42 = vector.extract_strided_slice %30 {offsets = [0, 128], sizes = [4, 128], strides = [1, 1]} : vector<4x256xf32> to vector<4x128xf32>
    %43 = arith.addf %39, %42 : vector<4x128xf32>
    %44 = vector.extract_strided_slice %33 {offsets = [0, 128], sizes = [4, 128], strides = [1, 1]} : vector<4x256xf32> to vector<4x128xf32>
    %45 = arith.addf %41, %44 : vector<4x128xf32>
    %c0_15 = arith.constant 0 : index
    %c0_16 = arith.constant 0 : index
    %c0_17 = arith.constant 0 : index
    %46 = vector.load %arg4[%c0_15, %c0_16, %c0_17] : memref<1x4x128xf32, #tpu.memory_space<vmem>>, vector<1x4x128xf32>
    %47 = vector.shape_cast %46 : vector<1x4x128xf32> to vector<4x128xf32>
    %48 = vector.shape_cast %43 : vector<4x128xf32> to vector<1x4x128xf32>
    tpu.vector_store %arg4[%c0_15, %c0_16, %c0_17], %48 {strides = array<i32>} : memref<1x4x128xf32, #tpu.memory_space<vmem>>, vector<1x4x128xf32>,
    %c0_18 = arith.constant 0 : index
    %c0_19 = arith.constant 0 : index
    %c0_20 = arith.constant 0 : index
    %49 = vector.load %arg5[%c0_18, %c0_19, %c0_20] : memref<1x4x128xf32, #tpu.memory_space<vmem>>, vector<1x4x128xf32>
    %50 = vector.shape_cast %49 : vector<1x4x128xf32> to vector<4x128xf32>
    %51 = vector.shape_cast %45 : vector<4x128xf32> to vector<1x4x128xf32>
    tpu.vector_store %arg5[%c0_18, %c0_19, %c0_20], %51 {strides = array<i32>} : memref<1x4x128xf32, #tpu.memory_space<vmem>>, vector<1x4x128xf32>,
    return
  }
  func.func @transform_0(%arg0: i32, %arg1: i32) -> (i32, i32, i32) {
    %c0_i32 = arith.constant 0 : i32
    %c0_i32_0 = arith.constant 0 : i32
    return %arg0, %c0_i32, %arg1 : i32, i32, i32
  }
  func.func @transform_1(%arg0: i32, %arg1: i32) -> (i32, i32, i32) {
    %c0_i32 = arith.constant 0 : i32
    %c0_i32_0 = arith.constant 0 : i32
    return %arg0, %c0_i32, %arg1 : i32, i32, i32
  }
  func.func @transform_2(%arg0: i32, %arg1: i32) -> (i32, i32, i32) {
    %c0_i32 = arith.constant 0 : i32
    %c0_i32_0 = arith.constant 0 : i32
    %c0_i32_1 = arith.constant 0 : i32
    return %arg0, %c0_i32, %c0_i32_0 : i32, i32, i32
  }
  func.func @transform_3(%arg0: i32, %arg1: i32) -> (i32, i32, i32) {
    %c0_i32 = arith.constant 0 : i32
    %c0_i32_0 = arith.constant 0 : i32
    %c0_i32_1 = arith.constant 0 : i32
    return %arg0, %c0_i32, %c0_i32_0 : i32, i32, i32
  }
}

</mosaic_0001>

<llo_original>
// kernel: dice_loss.1
$region0: #{dice_loss.1}
  #allocation0 [shape = 'u32[]', space=smem, size = 0x4, offset = 0x4, fixed_abs, tag = 'smem constant byte address 0x4 - core index']
  #allocation1 [shape = 'u32[144,128]{1,0:T(1,128)}', space=vmem, size = 0x12000, scoped, tag = 'internal scratch']
  %s0 = inlined_call_operand.vmem [shape: f32[2,4,256], index: 0, kind: input, shape index: {}]
  %s1 = inlined_call_operand.vmem [shape: s32[2,1,256], index: 1, kind: input, shape index: {}]
  %s2 = inlined_call_operand.vmem [shape: f32[2,4,128], index: 2, kind: output, shape index: {0}]
  %s3 = inlined_call_operand.vmem [shape: f32[2,4,128], index: 3, kind: output, shape index: {1}]
  %4 = xla_tuple %s2, %s3
  %s5 = sld [smem:[#allocation0]]
  $region53: #{dice_loss.1} parent=0
    _
  %s7 = ssub.s32 1, %s5
  %s8 = scalar_select 0, %s7, %s5
  loop: start=0, step=1, limit=4
  $region2: #{dice_loss.1} parent=0 // loop_pre_header
    _
  $region3: #{dice_loss.1} parent=0 // loop_header
    %s10 = sphi 0, %s14
    %p11 = scmp.ge.s32.totalorder %s10, 4
    %s17 = sphi 0, %s29
    %s18 = sphi 0, %s25
    %s19 = sphi 0, %s17
    %s20 = sphi 0, %s18
    %s21 = sphi 0, %s19
    %s22 = sphi 0, %s20
    %s34 = sphi 0, %s36
    %s37 = sphi 0, %s34
    %s38 = sphi 0, %s37
    %s54 = sphi 0, %s38
    %s62 = sphi 0, %s64
    %s65 = sphi 0, %s62
    %s66 = sphi 0, %s65
    %s82 = sphi 0, %s66
    %s88 = sphi 0, %s90
    %s91 = sphi 0, %s88
    %s92 = sphi 0, %s91
    %s108 = sphi 0, %s92
    %s114 = sphi 0, %s116
    %s117 = sphi 0, %s114
    %s118 = sphi 0, %s117
    %s134 = sphi 0, %s118
  $region4: #{dice_loss.1} parent=0 // loop_header_branch
    %13 = sbr.rel (%p11) target = $region8
  $region5: #{dice_loss.1} parent=0 // loop_body
    %s15 = ssub.s32 %s10, 1
    %s16 = ssub.s32 %s10, 2
    %s23 = sadd.s32 1, %s18
    %p24 = scmp.ge.s32.totalorder %s23, 1
    %s25 = scalar_select %p24, 0, %s23
    %s26 = sadd.s32 1, %s17
    %s27 = scalar_select %p24, %s26, %s17
    %p28 = scmp.ge.s32.totalorder %s27, 2
    %s29 = scalar_select %p28, 0, %s27
    %s30 = ssub.s32 %s17, %s29
    %s31 = ssub.s32 %s18, %s25
    %s32 = sor.u32 %s30, %s31
    %p33 = scmp.eq.s32.totalorder %s32, 0
    %s35 = sadd.s32 %s34, 1
    %s36 = scalar_select %p33, %s34, %s35
    %p39 = pneg %p33
    %p40 = scmp.eq.s32.totalorder %s10, 1
    %p41 = por %p39, %p40
    %p42 = scmp.ne.s32.totalorder %s34, %s37
    %p43 = scmp.eq.s32.totalorder %s10, 0
    %p44 = por %p42, %p43
    %p45 = scmp.ne.s32.totalorder %s34, %s37
    %p46 = scmp.eq.s32.totalorder %s15, 1
    %p47 = por %p45, %p46
    %p48 = scmp.ne.s32.totalorder %s37, %s38
    %p49 = scmp.eq.s32.totalorder %s15, 0
    %p50 = por %p48, %p49
    %p51 = scmp.ne.s32.totalorder %s37, %s38
    %p52 = scmp.eq.s32.totalorder %s16, 1
    %p53 = por %p51, %p52
    %p55 = scmp.ne.s32.totalorder %s38, %s54
    %p56 = scmp.eq.s32.totalorder %s16, 0
    %p57 = por %p55, %p56
    %s58 = ssub.s32 %s17, %s29
    %s59 = ssub.s32 %s18, %s25
    %s60 = sor.u32 %s58, %s59
    %p61 = scmp.eq.s32.totalorder %s60, 0
    %s63 = sadd.s32 %s62, 1
    %s64 = scalar_select %p61, %s62, %s63
    %p67 = pneg %p61
    %p68 = scmp.eq.s32.totalorder %s10, 1
    %p69 = por %p67, %p68
    %p70 = scmp.ne.s32.totalorder %s62, %s65
    %p71 = scmp.eq.s32.totalorder %s10, 0
    %p72 = por %p70, %p71
    %p73 = scmp.ne.s32.totalorder %s62, %s65
    %p74 = scmp.eq.s32.totalorder %s15, 1
    %p75 = por %p73, %p74
    %p76 = scmp.ne.s32.totalorder %s65, %s66
    %p77 = scmp.eq.s32.totalorder %s15, 0
    %p78 = por %p76, %p77
    %p79 = scmp.ne.s32.totalorder %s65, %s66
    %p80 = scmp.eq.s32.totalorder %s16, 1
    %p81 = por %p79, %p80
    %p83 = scmp.ne.s32.totalorder %s66, %s82
    %p84 = scmp.eq.s32.totalorder %s16, 0
    %p85 = por %p83, %p84
    %s86 = ssub.s32 %s17, %s29
    %p87 = scmp.eq.s32.totalorder %s86, 0
    %s89 = sadd.s32 %s88, 1
    %s90 = scalar_select %p87, %s88, %s89
    %p93 = pneg %p87
    %p94 = scmp.eq.s32.totalorder %s10, 1
    %p95 = por %p93, %p94
    %p96 = scmp.ne.s32.totalorder %s88, %s91
    %p97 = scmp.eq.s32.totalorder %s10, 0
    %p98 = por %p96, %p97
    %p99 = scmp.ne.s32.totalorder %s88, %s91
    %p100 = scmp.eq.s32.totalorder %s15, 1
    %p101 = por %p99, %p100
    %p102 = scmp.ne.s32.totalorder %s91, %s92
    %p103 = scmp.eq.s32.totalorder %s15, 0
    %p104 = por %p102, %p103
    %p105 = scmp.ne.s32.totalorder %s91, %s92
    %p106 = scmp.eq.s32.totalorder %s16, 1
    %p107 = por %p105, %p106
    %p109 = scmp.ne.s32.totalorder %s92, %s108
    %p110 = scmp.eq.s32.totalorder %s16, 0
    %p111 = por %p109, %p110
    %s112 = ssub.s32 %s17, %s29
    %p113 = scmp.eq.s32.totalorder %s112, 0
    %s115 = sadd.s32 %s114, 1
    %s116 = scalar_select %p113, %s114, %s115
    %p119 = pneg %p113
    %p120 = scmp.eq.s32.totalorder %s10, 1
    %p121 = por %p119, %p120
    %p122 = scmp.ne.s32.totalorder %s114, %s117
    %p123 = scmp.eq.s32.totalorder %s10, 0
    %p124 = por %p122, %p123
    %p125 = scmp.ne.s32.totalorder %s114, %s117
    %p126 = scmp.eq.s32.totalorder %s15, 1
    %p127 = por %p125, %p126
    %p128 = scmp.ne.s32.totalorder %s117, %s118
    %p129 = scmp.eq.s32.totalorder %s15, 0
    %p130 = por %p128, %p129
    %p131 = scmp.ne.s32.totalorder %s117, %s118
    %p132 = scmp.eq.s32.totalorder %s16, 1
    %p133 = por %p131, %p132
    %p135 = scmp.ne.s32.totalorder %s118, %s134
    %p136 = scmp.eq.s32.totalorder %s16, 0
    %p137 = por %p135, %p136
    %p138 = scmp.le.s32.totalorder 1, %s10
    %p139 = scmp.lt.s32.totalorder %s10, 3
    %p140 = pnand %p138, %p139
    %p141 = pneg %p140
    // Predicated region
    $region9: #{dice_loss.1} parent=5 // pred_check
      _
    $region10: #{dice_loss.1} parent=5 // pred_check_branch
      %143 = sbr.rel (%p140) target = $region12
    $region11: #{dice_loss.1} parent=5 // pred_region
      %s144 = ssub.s32 %s10, 1
    $region12: #{dice_loss.1} parent=5 // pred_fallthru
      _
    %p145 = scmp.lt.s32.totalorder %s10, 2
    // Predicated region
    $region13: #{dice_loss.1} parent=5 // pred_check
      %p146 = pneg %p145
    $region14: #{dice_loss.1} parent=5 // pred_check_branch
      %148 = sbr.rel (%p146) target = $region16
    $region15: #{dice_loss.1} parent=5 // pred_region
      // Predicated region
      $region17: #{dice_loss.1} parent=15 // pred_check
        %p149 = pneg %p44
      $region18: #{dice_loss.1} parent=15 // pred_check_branch
        %151 = sbr.rel (%p149) target = $region20
      $region19: #{dice_loss.1} parent=15 // pred_region
        %s152 = smul.u32 2, %s18
        %p153 = scmp.lt.s32.totalorder %s17, 1
        %s154 = scalar_select %p153, %s17, 1
        %p155 = scmp.lt.s32.totalorder %s152, 1
        %s156 = scalar_select %p155, %s152, 1
        %s157 = smul.addr %s154, 2
        %s158 = sadd.s32 %s156, %s157
        %s159 = smul.addr %s158, 4
        %s160 = scalar_lea.vmem %s0, %s159
        %s161 = smul.u32 2, %s18
      $region20: #{dice_loss.1} parent=15 // pred_fallthru
        _
      // Predicated region
      $region21: #{dice_loss.1} parent=15 // pred_check
        %p162 = pneg %p72
      $region22: #{dice_loss.1} parent=15 // pred_check_branch
        %164 = sbr.rel (%p162) target = $region24
      $region23: #{dice_loss.1} parent=15 // pred_region
        %s165 = smul.u32 2, %s18
        %p166 = scmp.lt.s32.totalorder %s17, 1
        %s167 = scalar_select %p166, %s17, 1
        %p168 = scmp.lt.s32.totalorder %s165, 1
        %s169 = scalar_select %p168, %s165, 1
        %s170 = smul.addr %s167, 2
        %s171 = sadd.s32 %s169, %s170
        %s172 = scalar_lea.vmem %s1, %s171
        %s173 = smul.u32 2, %s18
      $region24: #{dice_loss.1} parent=15 // pred_fallthru
        _
    $region16: #{dice_loss.1} parent=5 // pred_fallthru
      _
    %p174 = scmp.le.s32.totalorder 1, %s10
    %p175 = scmp.lt.s32.totalorder %s10, 3
    %p176 = pnand %p174, %p175
    %p177 = pneg %p176
    // Predicated region
    $region25: #{dice_loss.1} parent=5 // pred_check
      _
    $region26: #{dice_loss.1} parent=5 // pred_check_branch
      %179 = sbr.rel (%p176) target = $region28
    $region27: #{dice_loss.1} parent=5 // pred_region
      %s180 = ssub.s32 %s10, 1
      %s181 = smul.u32 2, %s20
      %p182 = scmp.lt.s32.totalorder %s19, 1
      %s183 = scalar_select %p182, %s19, 1
      %p184 = scmp.lt.s32.totalorder %s181, 1
      %s185 = scalar_select %p184, %s181, 1
      %s186 = smul.addr %s183, 2
      %s187 = sadd.s32 %s185, %s186
      %s188 = smul.addr %s187, 4
      %s189 = scalar_lea.vmem %s0, %s188
      %p190 = pneg %p50
      %p191 = pneg %p47
      %s192 = smul.u32 2, %s20
      %p193 = scmp.lt.s32.totalorder %s19, 1
      %s194 = scalar_select %p193, %s19, 1
      %p195 = scmp.lt.s32.totalorder %s192, 1
      %s196 = scalar_select %p195, %s192, 1
      %s197 = smul.addr %s194, 2
      %s198 = sadd.s32 %s196, %s197
      %s199 = scalar_lea.vmem %s1, %s198
      %p200 = pneg %p78
      %p201 = pneg %p75
      %p202 = pneg %p104
      %p203 = pneg %p101
      %p204 = scmp.lt.s32.totalorder %s19, 1
      %s205 = scalar_select %p204, %s19, 1
      %s206 = smul.addr %s205, 4
      %s207 = scalar_lea.vmem %s2, %s206
      %p208 = pneg %p130
      %p209 = pneg %p127
      %p210 = scmp.lt.s32.totalorder %s19, 1
      %s211 = scalar_select %p210, %s19, 1
      %s212 = smul.addr %s211, 4
      %s213 = scalar_lea.vmem %s3, %s212
      %s214 = smul.u32 2, %s20
      %p215 = scmp.lt.s32.totalorder %s19, 1
      %s216 = scalar_select %p215, %s19, 1
      %p217 = scmp.lt.s32.totalorder %s214, 1
      %s218 = scalar_select %p217, %s214, 1
      %s219 = smul.addr %s216, 2
      %s220 = sadd.s32 %s218, %s219
      %s221 = smul.addr %s220, 4
      %s222 = scalar_lea.vmem %s0, %s221
      %s223 = smul.u32 2, %s20
      %s224 = smul.u32 2, %s20
      %p225 = scmp.lt.s32.totalorder %s19, 1
      %s226 = scalar_select %p225, %s19, 1
      %p227 = scmp.lt.s32.totalorder %s224, 1
      %s228 = scalar_select %p227, %s224, 1
      %s229 = smul.addr %s226, 2
      %s230 = sadd.s32 %s228, %s229
      %s231 = scalar_lea.vmem %s1, %s230
      %s232 = smul.u32 2, %s20
      %p233 = scmp.lt.s32.totalorder %s19, 1
      %s234 = scalar_select %p233, %s19, 1
      %s235 = smul.addr %s234, 4
      %s236 = scalar_lea.vmem %s2, %s235
      %p237 = scmp.lt.s32.totalorder %s19, 1
      %s238 = scalar_select %p237, %s19, 1
      %s239 = smul.addr %s238, 4
      %s240 = scalar_lea.vmem %s3, %s239
      %p241 = scmp.eq.s32.totalorder %s20, 0
      // Predicated region
      $region29: #{dice_loss.1} parent=27 // pred_check
        %p242 = pneg %p241
      $region30: #{dice_loss.1} parent=27 // pred_check_branch
        %244 = sbr.rel (%p242) target = $region32
      $region31: #{dice_loss.1} parent=27 // pred_region
        %245 = vst [vmem:[%s236] sm:$0xf] 0.0
        %246 = vst [vmem:[%s240] sm:$0xf] 0.0
      $region32: #{dice_loss.1} parent=27 // pred_fallthru
        _
      %v247 = vld [vmem:[%s231] sm:$0x3]
      %vm248 = vcmp.ge.s32.totalorder %v247, 0
      %v249 = vsel %vm248, 1, 0
      %v250 = vcvt.s32.f32 %v249
      %v251 = vld [vmem:[%s222] sm:$0xff]
      %v252 = vlaneseq
      %v253 = vshrl.u32 %v252, 7
      %v254 = vsub.s32 0, %v253
      %v255 = vrot.slane %v249, %v254
      %v256 = vlaneseq
      %v257 = vshrl.u32 %v256, 7
      %v258 = vsub.s32 1, %v257
      %v259 = vrot.slane %v249, %v258
      %vm260 = vcmp.eq.s32.totalorder %v255, 1
      %vm261 = vcmp.eq.s32.totalorder %v259, 1
      %v263 = vcombine.high %v251, %v251
      %v265 = vsel %vm260, %v251, 0.0
      %v266 = vsel %vm261, %v263, 0.0
      %vm267 = vcmask 1043456
      %v268 = vsel %vm267, %v265, -inf
      %v269 = vrot.slane %v268, 4
      %v270 = vmax.f32 %v268, %v269
      %v271 = vrot.slane %v270, 2
      %v272 = vmax.f32 %v270, %v271
      %v273 = vrot.slane %v272, 1
      %v274 = vmax.f32 %v272, %v273
      %v275 = vsel %vm267, %v266, -inf
      %v276 = vrot.slane %v275, 4
      %v277 = vmax.f32 %v275, %v276
      %v278 = vrot.slane %v277, 2
      %v279 = vmax.f32 %v277, %v278
      %v280 = vrot.slane %v279, 1
      %v281 = vmax.f32 %v279, %v280
      %v282 = vsub.f32 %v265, %v274
      %v283 = vsub.f32 %v266, %v281
      %v284 = vmul.f32 %v282, 1.442695
      %v285 = vpow.pop %v284
      %v286 = vmul.f32 %v283, 1.442695
      %v287 = vpow.pop %v286
      %v288 = vsel %vm267, %v285, 0.0
      %v289 = vrot.slane %v288, 4
      %v290 = vadd.f32 %v288, %v289
      %v291 = vrot.slane %v290, 2
      %v292 = vadd.f32 %v290, %v291
      %v293 = vrot.slane %v292, 1
      %v294 = vadd.f32 %v292, %v293
      %v295 = vsel %vm267, %v287, 0.0
      %v296 = vrot.slane %v295, 4
      %v297 = vadd.f32 %v295, %v296
      %v298 = vrot.slane %v297, 2
      %v299 = vadd.f32 %v297, %v298
      %v300 = vrot.slane %v299, 1
      %v301 = vadd.f32 %v299, %v300
      %v302 = vrcp.pop %v294
      %v303 = vrcp.pop %v301
      %v304 = vmul.f32 %v285, %v302
      %v305 = vmul.f32 %v287, %v303
      %v306 = vlaneseq
      %v307 = vshrl.u32 %v306, 7
      %v308 = vlaneseq
      %v309 = vshrl.u32 %v308, 7
      %v310 = vsub.s32 0, %v309
      %v311 = vrot.slane %v247, %v310
      %v312 = vlaneseq
      %v313 = vshrl.u32 %v312, 7
      %v314 = vsub.s32 1, %v313
      %v315 = vrot.slane %v247, %v314
      %vm316 = vcmp.eq.s32.totalorder %v307, %v311
      %vm317 = vcmp.eq.s32.totalorder %v307, %v315
      %v318 = vsel %vm316, 1, 0
      %v319 = vsel %vm317, 1, 0
      %v320 = vcvt.s32.f32 %v318
      %v321 = vcvt.s32.f32 %v319
      %v322 = vmul.f32 %v304, %v320
      %v323 = vmul.f32 %v305, %v321
      %v325 = vlaneseq
      %v326 = vshrl.u32 %v325, 7
      %v327 = vsub.s32 0, %v326
      %v328 = vrot.slane %v250, %v327
      %v329 = vlaneseq
      %v330 = vshrl.u32 %v329, 7
      %v331 = vsub.s32 1, %v330
      %v332 = vrot.slane %v250, %v331
      %v335 = vmul.f32 %v304, %v328
      %v336 = vmul.f32 %v305, %v332
      %v337 = vadd.f32 %v335, %v320
      %v338 = vadd.f32 %v336, %v321
      %v339 = vld [vmem:[%s236] sm:$0xf]
      %v340 = vld [vmem:[%s240] sm:$0xf]
      %v341 = vadd.f32 %v339, %v322
      %v342 = vadd.f32 %v340, %v337
      %v343 = vadd.f32 %v341, %v323
      %v344 = vadd.f32 %v342, %v338
      %345 = vst [vmem:[%s236] sm:$0xf] %v343
      %346 = vst [vmem:[%s240] sm:$0xf] %v344
      %p347 = scmp.lt.s32.totalorder %s19, 1
      %s348 = scalar_select %p347, %s19, 1
      %s349 = smul.addr %s348, 4
      %s350 = scalar_lea.vmem %s2, %s349
      %p351 = scmp.lt.s32.totalorder %s19, 1
      %s352 = scalar_select %p351, %s19, 1
      %s353 = smul.addr %s352, 4
      %s354 = scalar_lea.vmem %s3, %s353
      // Predicated region
      $region33: #{dice_loss.1} parent=27 // pred_check
        %p355 = pneg %p101
      $region34: #{dice_loss.1} parent=27 // pred_check_branch
        %357 = sbr.rel (%p355) target = $region36
      $region35: #{dice_loss.1} parent=27 // pred_region
        _
      $region36: #{dice_loss.1} parent=27 // pred_fallthru
        _
      // Predicated region
      $region37: #{dice_loss.1} parent=27 // pred_check
        %p358 = pneg %p127
      $region38: #{dice_loss.1} parent=27 // pred_check_branch
        %360 = sbr.rel (%p358) target = $region40
      $region39: #{dice_loss.1} parent=27 // pred_region
        _
      $region40: #{dice_loss.1} parent=27 // pred_fallthru
        _
    $region28: #{dice_loss.1} parent=5 // pred_fallthru
      _
    %p361 = scmp.le.s32.totalorder 2, %s10
    // Predicated region
    $region41: #{dice_loss.1} parent=5 // pred_check
      %p362 = pneg %p361
    $region42: #{dice_loss.1} parent=5 // pred_check_branch
      %364 = sbr.rel (%p362) target = $region44
    $region43: #{dice_loss.1} parent=5 // pred_region
      %s365 = ssub.s32 %s10, 2
      // Predicated region
      $region45: #{dice_loss.1} parent=43 // pred_check
        %p366 = pneg %p107
      $region46: #{dice_loss.1} parent=43 // pred_check_branch
        %368 = sbr.rel (%p366) target = $region48
      $region47: #{dice_loss.1} parent=43 // pred_region
        %p369 = scmp.lt.s32.totalorder %s21, 1
        %s370 = scalar_select %p369, %s21, 1
        %s371 = smul.addr %s370, 4
        %s372 = scalar_lea.vmem %s2, %s371
      $region48: #{dice_loss.1} parent=43 // pred_fallthru
        _
      // Predicated region
      $region49: #{dice_loss.1} parent=43 // pred_check
        %p373 = pneg %p133
      $region50: #{dice_loss.1} parent=43 // pred_check_branch
        %375 = sbr.rel (%p373) target = $region52
      $region51: #{dice_loss.1} parent=43 // pred_region
        %p376 = scmp.lt.s32.totalorder %s21, 1
        %s377 = scalar_select %p376, %s21, 1
        %s378 = smul.addr %s377, 4
        %s379 = scalar_lea.vmem %s3, %s378
      $region52: #{dice_loss.1} parent=43 // pred_fallthru
        _
    $region44: #{dice_loss.1} parent=5 // pred_fallthru
      _
  $region6: #{dice_loss.1} parent=0 // loop_footer
    %s14 = sadd.s32 1, %s10
  $region7: #{dice_loss.1} parent=0 // loop_footer_branch
    %9 = sbr.rel target = $region3
  $region8: #{dice_loss.1} parent=0 // loop_exit
    _

</llo_original>
